<compile_context>
chip_gen: v5e
topology: v5e:2x2
jax: 0.10.0
libtpu: 0.0.40
codegen_flags: <defaults>
</compile_context>

<pallas_src>
import functools

import jax
import jax.numpy as jnp
from jax.experimental import pallas as pl
from jax.experimental.pallas import tpu as pltpu


_LANES = 128


def _round_up(x, m):
    return (x + m - 1) // m * m


def _full_spec(shape):
    # Whole-array block (block shape == array shape always satisfies tiling).
    return pl.BlockSpec(shape, lambda: (0,) * len(shape))


# ---------------------------------------------------------------------------
# Fused Pallas kernel: streamed adjacency + all GIN layers + sum readout
# ---------------------------------------------------------------------------
def _gin_fused_kernel(adj_hbm, g_ref, x_ref, w1_ref, b1_ref, w2_ref, b2_ref,
                      node_ref, graph_ref,
                      adj_res, stage, upd_ref, sem, *,
                      eps, num_layers, short_cuts, compute_dtype,
                      row_chunks, eps_in_adj):
    """All GIN conv layers + sum readout, adjacency DMA'd from HBM once."""
    n_chunks = len(row_chunks)
    tr = stage.shape[1]
    need_resident = num_layers > 1

    def _copy(ci, slot):
        r0, rs = row_chunks[ci]
        src = adj_hbm.at[pl.ds(r0, rs), :]
        dst = stage.at[slot] if rs == tr else stage.at[slot, pl.ds(0, rs), :]
        return pltpu.make_async_copy(src, dst, sem.at[slot])

    def _mlp(z, l, h_prev):
        h1 = jnp.dot(z.astype(compute_dtype), w1_ref[l],
                     preferred_element_type=jnp.float32) + b1_ref[l]
        h1 = jnp.maximum(h1, 0.0)
        h2 = jnp.dot(h1.astype(compute_dtype), w2_ref[l],
                     preferred_element_type=jnp.float32) + b2_ref[l]
        h_new = jnp.maximum(h2, 0.0)              # combine() activation
        if short_cuts[l]:
            h_new = h_new + h_prev
        return h_new

    h = x_ref[...]                                # (N, Dp) f32
    h_c = h.astype(compute_dtype)

    # ---- layer 0: stream adjacency row tiles, overlap DMA with MXU work ----
    _copy(0, 0).start()
    for ci, (r0, rs) in enumerate(row_chunks):    # static unroll
        slot = ci & 1
        _copy(ci, slot).wait()
        if ci + 1 < n_chunks:
            _copy(ci + 1, 1 - slot).start()       # prefetch next tile
        raw = stage[slot] if rs == tr else stage[slot, pl.ds(0, rs), :]
        tile = raw.astype(compute_dtype)          # widen int8/f32 -> bf16 (VPU)
        if need_resident:
            adj_res[pl.ds(r0, rs), :] = tile      # park for layers 1..L-1
        upd_ref[pl.ds(r0, rs), :] = jnp.dot(
            tile, h_c, preferred_element_type=jnp.float32)

    update = upd_ref[...]
    z = update if eps_in_adj else (1.0 + eps) * h + update
    h = _mlp(z, 0, h)

    # ---- layers 1..L-1: adjacency is fully VMEM-resident ----
    for l in range(1, num_layers):
        update = jnp.dot(adj_res[...], h.astype(compute_dtype),
                         preferred_element_type=jnp.float32)
        z = update if eps_in_adj else (1.0 + eps) * h + update
        h = _mlp(z, l, h)

    node_ref[...] = h
    # Sum readout fused into the same call (one-hot graph-assignment matmul).
    graph_ref[...] = jnp.dot(g_ref[...].astype(compute_dtype),
                             h.astype(compute_dtype),
                             preferred_element_type=jnp.float32)


# ---------------------------------------------------------------------------
# One-time parameter prep (hoisted out of the per-call forward path)
# ---------------------------------------------------------------------------
def prepare_gin_params(params, compute_dtype=jnp.bfloat16):
    """Zero-pad MLP weights to (Dp, Dp), stack per layer, cast matmul operands.

    Padded columns/rows are exactly zero, so results equal the unpadded math.
    Call ONCE per model; the per-forward cost is then just adj / g / x prep.
    """
    dims = [params[0][0].shape[0]] + [w2.shape[1] for (_, _, w2, _) in params]
    d_pad = _round_up(max(max(dims), _LANES), _LANES)
    w1s, b1s, w2s, b2s = [], [], [], []
    for (w1, b1, w2, b2) in params:
        w1s.append(jnp.zeros((d_pad, d_pad), jnp.float32)
                   .at[:w1.shape[0], :w1.shape[1]].set(w1))
        b1s.append(jnp.zeros((1, d_pad), jnp.float32)
                   .at[:, :b1.shape[1]].set(b1))
        w2s.append(jnp.zeros((d_pad, d_pad), jnp.float32)
                   .at[:w2.shape[0], :w2.shape[1]].set(w2))
        b2s.append(jnp.zeros((1, d_pad), jnp.float32)
                   .at[:, :b2.shape[1]].set(b2))
    return {
        "w1": jnp.stack(w1s).astype(compute_dtype),   # (L, Dp, Dp)
        "b1": jnp.stack(b1s),                         # (L, 1, Dp) f32
        "w2": jnp.stack(w2s).astype(compute_dtype),   # (L, Dp, Dp)
        "b2": jnp.stack(b2s),                         # (L, 1, Dp) f32
        "dims": tuple(int(d) for d in dims),
        "d_pad": int(d_pad),
        "compute_dtype": compute_dtype,
    }


# ---------------------------------------------------------------------------
# Forward wrapper: single fused pallas_call
# ---------------------------------------------------------------------------
def gin_forward(adj, graph_onehot, x, prep, eps=0.0, short_cut=False,
                eps_in_adj=False):
    """Fused GIN forward. Returns {'node_feature', 'graph_feature'}.

    `adj[dst, src]` is the dense adjacency in its *storage* dtype:
      - int8 for 0/1 graphs (exact, minimal HBM traffic),
      - bf16/f32 for arbitrary edge weights (bf16 rounds the weights).
    No wrapper-side cast over N^2 is emitted; the kernel widens per tile.
    Set eps_in_adj=True only if (1+eps)*I is already folded into adj.
    """
    n = x.shape[0]
    ng = graph_onehot.shape[0]
    assert adj.shape == (n, n) and graph_onehot.shape == (ng, n)

    compute_dtype = prep["compute_dtype"]
    dims = prep["dims"]
    d_pad = prep["d_pad"]
    num_layers = len(dims) - 1

    cds = jnp.dtype(compute_dtype).itemsize
    ads = jnp.dtype(adj.dtype).itemsize

    ng_pad = max(8, _round_up(ng, 8))         # full-sublane graph-feature store

    x_p = jnp.zeros((n, d_pad), jnp.float32).at[:, :dims[0]].set(
        x.astype(jnp.float32))
    g_p = jnp.zeros((ng_pad, n), jnp.float32).at[:ng, :].set(
        graph_onehot.astype(jnp.float32))

    short_cuts = tuple(bool(short_cut) and dims[i + 1] == dims[i]
                       for i in range(num_layers))

    # Row tiling of the adjacency stream (contiguous HBM reads per tile).
    tr = min(n, 512)
    row_chunks, r = [], 0
    while r < n:
        rs = min(tr, n - r)
        row_chunks.append((r, rs))
        r += rs
    row_chunks = tuple(row_chunks)

    kernel = functools.partial(
        _gin_fused_kernel, eps=float(eps), num_layers=num_layers,
        short_cuts=short_cuts, compute_dtype=compute_dtype,
        row_chunks=row_chunks, eps_in_adj=bool(eps_in_adj))

    # VMEM budget derived from the actual resident set and the chip's VMEM
    # capacity (v5e/v6e 128 MiB, v7x 64 MiB), instead of a hard-coded 32 MiB.
    resident = (n * n * cds                              # resident adjacency
                + 2 * tr * n * ads                       # DMA staging buffers
                + n * d_pad * 4                          # layer-0 update
                + 2 * num_layers * d_pad * d_pad * cds   # stacked W1, W2
                + 2 * num_layers * 8 * d_pad * 4         # biases (sublane-pad)
                + n * d_pad * 4 + ng_pad * n * 4         # x, g inputs
                + n * d_pad * 4 + ng_pad * d_pad * 4)    # outputs
    needed = resident + 4 * n * d_pad * 4                # f32 temps (h,z,h1,h2)
    try:
        cap = int(getattr(pltpu.get_tpu_info(), "vmem_capacity_bytes", 0)) \
            or (64 << 20)
    except Exception:
        cap = 64 << 20
    vmem_limit = min(int(needed * 1.5) + (8 << 20), int(cap * 9 // 10))

    flops = (num_layers * (2 * n * n * d_pad + 2 * 2 * n * d_pad * d_pad)
             + 2 * ng_pad * n * d_pad)
    bytes_accessed = (n * n * ads + ng_pad * n * 4 + n * d_pad * 4
                      + 2 * num_layers * d_pad * d_pad * cds
                      + 2 * num_layers * d_pad * 4
                      + n * d_pad * 4 + ng_pad * d_pad * 4)

    node_p, graph_p = pl.pallas_call(
        kernel,
        out_shape=(jax.ShapeDtypeStruct((n, d_pad), jnp.float32),
                   jax.ShapeDtypeStruct((ng_pad, d_pad), jnp.float32)),
        in_specs=[pl.BlockSpec(memory_space=pl.ANY),      # adj stays in HBM
                  _full_spec(g_p.shape), _full_spec(x_p.shape),
                  _full_spec(prep["w1"].shape), _full_spec(prep["b1"].shape),
                  _full_spec(prep["w2"].shape), _full_spec(prep["b2"].shape)],
        out_specs=(_full_spec((n, d_pad)), _full_spec((ng_pad, d_pad))),
        scratch_shapes=[pltpu.VMEM((n, n), compute_dtype),    # resident adj
                        pltpu.VMEM((2, tr, n), adj.dtype),    # DMA staging
                        pltpu.VMEM((n, d_pad), jnp.float32),  # layer-0 update
                        pltpu.SemaphoreType.DMA((2,))],
        cost_estimate=pl.CostEstimate(flops=flops, transcendentals=0,
                                      bytes_accessed=bytes_accessed),
        compiler_params=pltpu.CompilerParams(vmem_limit_bytes=vmem_limit),
    )(adj, g_p, x_p, prep["w1"], prep["b1"], prep["w2"], prep["b2"])

    d_out = dims[-1]
    return {"graph_feature": graph_p[:ng, :d_out],
            "node_feature": node_p[:, :d_out]}


# ---------------------------------------------------------------------------
# Parameter init & pure-JAX reference
# ---------------------------------------------------------------------------
def init_gin_params(key, input_dim, hidden_dims, num_mlp_layer=2):
    """Deterministic parameter init mirroring the module's __init__ shapes."""
    dims = [input_dim] + list(hidden_dims)
    params = []
    for i in range(len(dims) - 1):
        d_in, d_out = dims[i], dims[i + 1]
        mlp_dims = [d_in] + [d_out] * (num_mlp_layer - 1) + [d_out]
        k1, k2, key = jax.random.split(key, 3)
        w1 = (jax.random.normal(k1, (mlp_dims[0], mlp_dims[1]), jnp.float32)
              / jnp.sqrt(mlp_dims[0]))
        b1 = jnp.zeros((1, mlp_dims[1]), jnp.float32)
        w2 = (jax.random.normal(k2, (mlp_dims[1], mlp_dims[2]), jnp.float32)
              / jnp.sqrt(mlp_dims[1]))
        b2 = jnp.zeros((1, mlp_dims[2]), jnp.float32)
        params.append((w1, b1, w2, b2))
    return params


def gin_forward_ref(adj, graph_onehot, x, params, eps=0.0, short_cut=False,
                    compute_dtype=jnp.float32):
    """Pure-JAX reference; casts to compute_dtype at the same dot boundaries."""
    cd = compute_dtype
    adj_c = adj.astype(cd)
    h = x
    for (w1, b1, w2, b2) in params:
        update = jnp.dot(adj_c, h.astype(cd), preferred_element_type=jnp.float32)
        z = (1.0 + eps) * h + update
        h1 = jnp.maximum(
            jnp.dot(z.astype(cd), w1.astype(cd),
                    preferred_element_type=jnp.float32) + b1, 0.0)
        h2 = jnp.dot(h1.astype(cd), w2.astype(cd),
                     preferred_element_type=jnp.float32) + b2
        h_new = jnp.maximum(h2, 0.0)
        if short_cut and h_new.shape == h.shape:
            h_new = h_new + h
        h = h_new
    gf = jnp.dot(graph_onehot.astype(cd), h.astype(cd),
                 preferred_element_type=jnp.float32)
    return gf, h


# ---------------------------------------------------------------------------
if __name__ == "__main__":
    key = jax.random.PRNGKey(0)

    num_nodes = 128          # |V|
    num_graphs = 2           # n graphs in the batch
    input_dim = 16
    hidden_dims = [32, 32]

    k_feat, k_adj, k_param = jax.random.split(key, 3)

    # Node features (|V|, input_dim)
    x = jax.random.normal(k_feat, (num_nodes, input_dim), jnp.float32)

    # Dense adjacency, block-diagonal over the 2 graphs (no cross-graph
    # edges). adj[dst, src] = edge weight (0/1 here).
    raw = jax.random.uniform(k_adj, (num_nodes, num_nodes), jnp.float32)
    adj_f32 = jnp.where(raw > 0.8, 1.0, 0.0)
    half = num_nodes // num_graphs
    block_mask = jnp.zeros((num_nodes, num_nodes), jnp.float32)
    block_mask = block_mask.at[:half, :half].set(1.0)
    block_mask = block_mask.at[half:, half:].set(1.0)
    adj_f32 = adj_f32 * block_mask
    # Binary graph -> store the adjacency as int8 in HBM (exact; minimal DMA
    # bytes). The fused kernel widens it to bf16 tile-by-tile inside VMEM.
    adj_i8 = adj_f32.astype(jnp.int8)

    # node -> graph one-hot assignment, shape (n_graphs, |V|)
    node2graph = jnp.concatenate(
        [jnp.zeros((half,), jnp.int32), jnp.ones((half,), jnp.int32)])
    graph_onehot = jax.nn.one_hot(node2graph, num_graphs,
                                  dtype=jnp.float32).T  # (2, 128)

    params = init_gin_params(k_param, input_dim, hidden_dims, num_mlp_layer=2)

    # One-time parameter prep (padding/stacking/casting hoisted out of forward).
    prep_bf16 = prepare_gin_params(params, compute_dtype=jnp.bfloat16)
    prep_f32 = prepare_gin_params(params, compute_dtype=jnp.float32)

    # Default (perf) path: int8 adjacency in HBM, bf16 MXU, f32 accumulation.
    fwd = jax.jit(functools.partial(gin_forward, prep=prep_bf16, eps=0.0))
    out = fwd(adj_i8, graph_onehot, x)
    jax.block_until_ready(out)
    assert out["node_feature"].shape == (num_nodes, hidden_dims[-1])
    assert out["graph_feature"].shape == (num_graphs, hidden_dims[-1])

    # Check 1 (tight): f32-compute kernel vs f32 pure-JAX reference.
    out_f32 = gin_forward(adj_i8, graph_onehot, x, prep_f32, eps=0.0)
    gf_r32, nf_r32 = gin_forward_ref(adj_f32, graph_onehot, x, params, eps=0.0,
                                     compute_dtype=jnp.float32)
    assert jnp.allclose(out_f32["node_feature"], nf_r32, atol=1e-3, rtol=1e-3)
    assert jnp.allclose(out_f32["graph_feature"], gf_r32, atol=1e-3, rtol=1e-3)

    # Check 2 (moderate): bf16 perf path vs reference with matching bf16 casts.
    gf_rbf, nf_rbf = gin_forward_ref(adj_f32, graph_onehot, x, params, eps=0.0,
                                     compute_dtype=jnp.bfloat16)
    assert jnp.allclose(out["node_feature"], nf_rbf, atol=2e-2, rtol=2e-2)
    assert jnp.allclose(out["graph_feature"], gf_rbf, atol=1e-1, rtol=2e-2)

    # Check 3 (loose, semantics): bf16 perf path vs full-f32 math.
    assert jnp.allclose(out["node_feature"], nf_r32, atol=0.5, rtol=1e-1)
    assert jnp.allclose(out["graph_feature"], gf_r32, atol=5.0, rtol=1e-1)

    print("KERNEL_OK")
</pallas_src>

<mosaic_0001>
module attributes {stable_mosaic.version = 11 : i64} {
  func.func @_gin_fused_kernel(%arg0: memref<128x128xi8, #tpu.memory_space<any>>, %arg1: memref<8x128xf32, #tpu.memory_space<vmem>>, %arg2: memref<128x128xf32, #tpu.memory_space<vmem>>, %arg3: memref<2x128x128xbf16, #tpu.memory_space<vmem>>, %arg4: memref<2x1x128xf32, #tpu.memory_space<vmem>>, %arg5: memref<2x128x128xbf16, #tpu.memory_space<vmem>>, %arg6: memref<2x1x128xf32, #tpu.memory_space<vmem>>, %arg7: memref<128x128xf32, #tpu.memory_space<vmem>>, %arg8: memref<8x128xf32, #tpu.memory_space<vmem>>, %arg9: memref<128x128xbf16, #tpu.memory_space<vmem>>, %arg10: memref<2x128x128xi8, #tpu.memory_space<vmem>>, %arg11: memref<128x128xf32, #tpu.memory_space<vmem>>, %arg12: memref<2x!tpu.dma_semaphore, #tpu.memory_space<semaphore_mem>>) attributes {dimension_semantics = [], scalar_prefetch = 0 : i64, scratch_operands = 4 : i64, tpu.core_type = #tpu.core_type<tc>} {
    %c0 = arith.constant 0 : index
    %c0_0 = arith.constant 0 : index
    %0 = vector.load %arg2[%c0, %c0_0] : memref<128x128xf32, #tpu.memory_space<vmem>>, vector<128x128xf32>
    %1 = arith.truncf %0 : vector<128x128xf32> to vector<128x128xbf16>
    %c0_i32 = arith.constant 0 : i32
    %c0_i32_1 = arith.constant 0 : i32
    %c0_i32_2 = arith.constant 0 : i32
    %c0_i32_3 = arith.constant 0 : i32
    %2 = tpu.memref_slice %arg0[%c0_i32_2, %c0_i32_3] : memref<128x128xi8, #tpu.memory_space<any>> -> memref<128x128xi8, #tpu.memory_space<any>>
    %c0_i32_4 = arith.constant 0 : i32
    %c0_i32_5 = arith.constant 0 : i32
    %3 = tpu.memref_slice %arg10[%c0_i32, %c0_i32_4, %c0_i32_5] : memref<2x128x128xi8, #tpu.memory_space<vmem>> -> memref<1x128x128xi8, #tpu.memory_space<vmem>>
    %4 = tpu.memref_squeeze %3 : memref<1x128x128xi8, #tpu.memory_space<vmem>> -> memref<128x128xi8, #tpu.memory_space<vmem>>
    %5 = tpu.memref_slice %arg12[%c0_i32_1] : memref<2x!tpu.dma_semaphore, #tpu.memory_space<semaphore_mem>> -> memref<1x!tpu.dma_semaphore, #tpu.memory_space<semaphore_mem>>
    %6 = tpu.memref_squeeze %5 : memref<1x!tpu.dma_semaphore, #tpu.memory_space<semaphore_mem>> -> memref<!tpu.dma_semaphore, #tpu.memory_space<semaphore_mem>>
    tpu.enqueue_dma source(%2 : memref<128x128xi8, #tpu.memory_space<any>>) target(%4 : memref<128x128xi8, #tpu.memory_space<vmem>>) target_semaphore(%6 : memref<!tpu.dma_semaphore, #tpu.memory_space<semaphore_mem>>)
    %c0_i32_6 = arith.constant 0 : i32
    %c0_i32_7 = arith.constant 0 : i32
    %c0_i32_8 = arith.constant 0 : i32
    %c0_i32_9 = arith.constant 0 : i32
    %7 = tpu.memref_slice %arg0[%c0_i32_8, %c0_i32_9] : memref<128x128xi8, #tpu.memory_space<any>> -> memref<128x128xi8, #tpu.memory_space<any>>
    %c0_i32_10 = arith.constant 0 : i32
    %c0_i32_11 = arith.constant 0 : i32
    %8 = tpu.memref_slice %arg10[%c0_i32_6, %c0_i32_10, %c0_i32_11] : memref<2x128x128xi8, #tpu.memory_space<vmem>> -> memref<1x128x128xi8, #tpu.memory_space<vmem>>
    %9 = tpu.memref_squeeze %8 : memref<1x128x128xi8, #tpu.memory_space<vmem>> -> memref<128x128xi8, #tpu.memory_space<vmem>>
    %10 = tpu.memref_slice %arg12[%c0_i32_7] : memref<2x!tpu.dma_semaphore, #tpu.memory_space<semaphore_mem>> -> memref<1x!tpu.dma_semaphore, #tpu.memory_space<semaphore_mem>>
    %11 = tpu.memref_squeeze %10 : memref<1x!tpu.dma_semaphore, #tpu.memory_space<semaphore_mem>> -> memref<!tpu.dma_semaphore, #tpu.memory_space<semaphore_mem>>
    tpu.wait_dma2 semaphore(%11 : memref<!tpu.dma_semaphore, #tpu.memory_space<semaphore_mem>>) src(%7 : memref<128x128xi8, #tpu.memory_space<any>>) dst(%9 : memref<128x128xi8, #tpu.memory_space<vmem>>)
    %c0_12 = arith.constant 0 : index
    %c0_13 = arith.constant 0 : index
    %c0_14 = arith.constant 0 : index
    %12 = vector.load %arg10[%c0_12, %c0_13, %c0_14] : memref<2x128x128xi8, #tpu.memory_space<vmem>>, vector<1x128x128xi8>
    %13 = vector.shape_cast %12 : vector<1x128x128xi8> to vector<128x128xi8>
    %14 = arith.sitofp %13 : vector<128x128xi8> to vector<128x128xbf16>
    %c0_15 = arith.constant 0 : index
    %c0_16 = arith.constant 0 : index
    %15 = vector.load %arg9[%c0_15, %c0_16] : memref<128x128xbf16, #tpu.memory_space<vmem>>, vector<128x128xbf16>
    tpu.vector_store %arg9[%c0_15, %c0_16], %14 {strides = array<i32>} : memref<128x128xbf16, #tpu.memory_space<vmem>>, vector<128x128xbf16>,
    %cst = arith.constant dense<0.000000e+00> : vector<128x128xf32>
    %16 = tpu.matmul %14, %1, %cst {dimension_numbers = #tpu.dot_dimension_numbers<[1], [0], [0], [1], [0, 0, 1, 1], [], []>} : vector<128x128xbf16>, vector<128x128xbf16>, vector<128x128xf32> -> vector<128x128xf32>
    %c0_17 = arith.constant 0 : index
    %c0_18 = arith.constant 0 : index
    %17 = vector.load %arg11[%c0_17, %c0_18] : memref<128x128xf32, #tpu.memory_space<vmem>>, vector<128x128xf32>
    tpu.vector_store %arg11[%c0_17, %c0_18], %16 {strides = array<i32>} : memref<128x128xf32, #tpu.memory_space<vmem>>, vector<128x128xf32>,
    %c0_19 = arith.constant 0 : index
    %c0_20 = arith.constant 0 : index
    %18 = vector.load %arg11[%c0_19, %c0_20] : memref<128x128xf32, #tpu.memory_space<vmem>>, vector<128x128xf32>
    %cst_21 = arith.constant 1.000000e+00 : f32
    %19 = vector.broadcast %cst_21 : f32 to vector<128x128xf32>
    %20 = arith.mulf %19, %0 : vector<128x128xf32>
    %21 = arith.addf %20, %18 : vector<128x128xf32>
    %22 = arith.truncf %21 : vector<128x128xf32> to vector<128x128xbf16>
    %c0_22 = arith.constant 0 : index
    %c0_23 = arith.constant 0 : index
    %c0_24 = arith.constant 0 : index
    %23 = vector.load %arg3[%c0_22, %c0_23, %c0_24] : memref<2x128x128xbf16, #tpu.memory_space<vmem>>, vector<1x128x128xbf16>
    %24 = vector.shape_cast %23 : vector<1x128x128xbf16> to vector<128x128xbf16>
    %cst_25 = arith.constant dense<0.000000e+00> : vector<128x128xf32>
    %25 = tpu.matmul %22, %24, %cst_25 {dimension_numbers = #tpu.dot_dimension_numbers<[1], [0], [0], [1], [0, 0, 1, 1], [], []>} : vector<128x128xbf16>, vector<128x128xbf16>, vector<128x128xf32> -> vector<128x128xf32>
    %c0_26 = arith.constant 0 : index
    %c0_27 = arith.constant 0 : index
    %c0_28 = arith.constant 0 : index
    %26 = vector.load %arg4[%c0_26, %c0_27, %c0_28] : memref<2x1x128xf32, #tpu.memory_space<vmem>>, vector<1x1x128xf32>
    %27 = vector.shape_cast %26 : vector<1x1x128xf32> to vector<1x128xf32>
    %28 = vector.broadcast %27 : vector<1x128xf32> to vector<128x128xf32>
    %29 = arith.addf %25, %28 : vector<128x128xf32>
    %cst_29 = arith.constant 0.000000e+00 : f32
    %30 = vector.broadcast %cst_29 : f32 to vector<128x128xf32>
    %31 = arith.maximumf %29, %30 : vector<128x128xf32>
    %32 = arith.truncf %31 : vector<128x128xf32> to vector<128x128xbf16>
    %c0_30 = arith.constant 0 : index
    %c0_31 = arith.constant 0 : index
    %c0_32 = arith.constant 0 : index
    %33 = vector.load %arg5[%c0_30, %c0_31, %c0_32] : memref<2x128x128xbf16, #tpu.memory_space<vmem>>, vector<1x128x128xbf16>
    %34 = vector.shape_cast %33 : vector<1x128x128xbf16> to vector<128x128xbf16>
    %cst_33 = arith.constant dense<0.000000e+00> : vector<128x128xf32>
    %35 = tpu.matmul %32, %34, %cst_33 {dimension_numbers = #tpu.dot_dimension_numbers<[1], [0], [0], [1], [0, 0, 1, 1], [], []>} : vector<128x128xbf16>, vector<128x128xbf16>, vector<128x128xf32> -> vector<128x128xf32>
    %c0_34 = arith.constant 0 : index
    %c0_35 = arith.constant 0 : index
    %c0_36 = arith.constant 0 : index
    %36 = vector.load %arg6[%c0_34, %c0_35, %c0_36] : memref<2x1x128xf32, #tpu.memory_space<vmem>>, vector<1x1x128xf32>
    %37 = vector.shape_cast %36 : vector<1x1x128xf32> to vector<1x128xf32>
    %38 = vector.broadcast %37 : vector<1x128xf32> to vector<128x128xf32>
    %39 = arith.addf %35, %38 : vector<128x128xf32>
    %cst_37 = arith.constant 0.000000e+00 : f32
    %40 = vector.broadcast %cst_37 : f32 to vector<128x128xf32>
    %41 = arith.maximumf %39, %40 : vector<128x128xf32>
    %c0_38 = arith.constant 0 : index
    %c0_39 = arith.constant 0 : index
    %42 = vector.load %arg9[%c0_38, %c0_39] : memref<128x128xbf16, #tpu.memory_space<vmem>>, vector<128x128xbf16>
    %43 = arith.truncf %41 : vector<128x128xf32> to vector<128x128xbf16>
    %cst_40 = arith.constant dense<0.000000e+00> : vector<128x128xf32>
    %44 = tpu.matmul %42, %43, %cst_40 {dimension_numbers = #tpu.dot_dimension_numbers<[1], [0], [0], [1], [0, 0, 1, 1], [], []>} : vector<128x128xbf16>, vector<128x128xbf16>, vector<128x128xf32> -> vector<128x128xf32>
    %cst_41 = arith.constant 1.000000e+00 : f32
    %45 = vector.broadcast %cst_41 : f32 to vector<128x128xf32>
    %46 = arith.mulf %45, %41 : vector<128x128xf32>
    %47 = arith.addf %46, %44 : vector<128x128xf32>
    %48 = arith.truncf %47 : vector<128x128xf32> to vector<128x128xbf16>
    %c1 = arith.constant 1 : index
    %c0_42 = arith.constant 0 : index
    %c0_43 = arith.constant 0 : index
    %49 = vector.load %arg3[%c1, %c0_42, %c0_43] : memref<2x128x128xbf16, #tpu.memory_space<vmem>>, vector<1x128x128xbf16>
    %50 = vector.shape_cast %49 : vector<1x128x128xbf16> to vector<128x128xbf16>
    %cst_44 = arith.constant dense<0.000000e+00> : vector<128x128xf32>
    %51 = tpu.matmul %48, %50, %cst_44 {dimension_numbers = #tpu.dot_dimension_numbers<[1], [0], [0], [1], [0, 0, 1, 1], [], []>} : vector<128x128xbf16>, vector<128x128xbf16>, vector<128x128xf32> -> vector<128x128xf32>
    %c1_45 = arith.constant 1 : index
    %c0_46 = arith.constant 0 : index
    %c0_47 = arith.constant 0 : index
    %52 = vector.load %arg4[%c1_45, %c0_46, %c0_47] : memref<2x1x128xf32, #tpu.memory_space<vmem>>, vector<1x1x128xf32>
    %53 = vector.shape_cast %52 : vector<1x1x128xf32> to vector<1x128xf32>
    %54 = vector.broadcast %53 : vector<1x128xf32> to vector<128x128xf32>
    %55 = arith.addf %51, %54 : vector<128x128xf32>
    %cst_48 = arith.constant 0.000000e+00 : f32
    %56 = vector.broadcast %cst_48 : f32 to vector<128x128xf32>
    %57 = arith.maximumf %55, %56 : vector<128x128xf32>
    %58 = arith.truncf %57 : vector<128x128xf32> to vector<128x128xbf16>
    %c1_49 = arith.constant 1 : index
    %c0_50 = arith.constant 0 : index
    %c0_51 = arith.constant 0 : index
    %59 = vector.load %arg5[%c1_49, %c0_50, %c0_51] : memref<2x128x128xbf16, #tpu.memory_space<vmem>>, vector<1x128x128xbf16>
    %60 = vector.shape_cast %59 : vector<1x128x128xbf16> to vector<128x128xbf16>
    %cst_52 = arith.constant dense<0.000000e+00> : vector<128x128xf32>
    %61 = tpu.matmul %58, %60, %cst_52 {dimension_numbers = #tpu.dot_dimension_numbers<[1], [0], [0], [1], [0, 0, 1, 1], [], []>} : vector<128x128xbf16>, vector<128x128xbf16>, vector<128x128xf32> -> vector<128x128xf32>
    %c1_53 = arith.constant 1 : index
    %c0_54 = arith.constant 0 : index
    %c0_55 = arith.constant 0 : index
    %62 = vector.load %arg6[%c1_53, %c0_54, %c0_55] : memref<2x1x128xf32, #tpu.memory_space<vmem>>, vector<1x1x128xf32>
    %63 = vector.shape_cast %62 : vector<1x1x128xf32> to vector<1x128xf32>
    %64 = vector.broadcast %63 : vector<1x128xf32> to vector<128x128xf32>
    %65 = arith.addf %61, %64 : vector<128x128xf32>
    %cst_56 = arith.constant 0.000000e+00 : f32
    %66 = vector.broadcast %cst_56 : f32 to vector<128x128xf32>
    %67 = arith.maximumf %65, %66 : vector<128x128xf32>
    %c0_57 = arith.constant 0 : index
    %c0_58 = arith.constant 0 : index
    %68 = vector.load %arg7[%c0_57, %c0_58] : memref<128x128xf32, #tpu.memory_space<vmem>>, vector<128x128xf32>
    tpu.vector_store %arg7[%c0_57, %c0_58], %67 {strides = array<i32>} : memref<128x128xf32, #tpu.memory_space<vmem>>, vector<128x128xf32>,
    %c0_59 = arith.constant 0 : index
    %c0_60 = arith.constant 0 : index
    %69 = vector.load %arg1[%c0_59, %c0_60] : memref<8x128xf32, #tpu.memory_space<vmem>>, vector<8x128xf32>
    %70 = arith.truncf %69 : vector<8x128xf32> to vector<8x128xbf16>
    %71 = arith.truncf %67 : vector<128x128xf32> to vector<128x128xbf16>
    %cst_61 = arith.constant dense<0.000000e+00> : vector<8x128xf32>
    %72 = tpu.matmul %70, %71, %cst_61 {dimension_numbers = #tpu.dot_dimension_numbers<[1], [0], [0], [1], [0, 0, 1, 1], [], []>} : vector<8x128xbf16>, vector<128x128xbf16>, vector<8x128xf32> -> vector<8x128xf32>
    %c0_62 = arith.constant 0 : index
    %c0_63 = arith.constant 0 : index
    %73 = vector.load %arg8[%c0_62, %c0_63] : memref<8x128xf32, #tpu.memory_space<vmem>>, vector<8x128xf32>
    tpu.vector_store %arg8[%c0_62, %c0_63], %72 {strides = array<i32>} : memref<8x128xf32, #tpu.memory_space<vmem>>, vector<8x128xf32>,
    return
  }
}

</mosaic_0001>

<llo_original>
// kernel: gin_forward.1
$region0: #{gin_forward.1}
  #allocation0 [shape = 'u32[]', space=smem, size = 0x4, offset = 0x4, fixed_abs, tag = 'smem constant byte address 0x4 - core index']
  #allocation1 [shape = 'u32[72,128]{1,0:T(1,128)}', space=vmem, size = 0x9000, scoped, tag = 'internal scratch']
  #allocation2 [shape = 'bf16[128,128]{1,0:T(8,128)(2,1)}', space=vmem, size = 0x8000, scoped, tag = 'scratch operand']
  #allocation3 [shape = 's8[2,128,128]{2,1,0:T(32,128)(4,1)}', space=vmem, size = 0x8000, scoped, tag = 'scratch operand']
  #allocation4 [shape = 'f32[128,128]{1,0:T(8,128)}', space=vmem, size = 0x10000, scoped, tag = 'scratch operand']
  #allocation5 [shape = 's32[2]{0}', space=sflag, size = 0x8, scoped, tag = 'scratch operand']
  #allocation6 [shape = 's32[]', space=sflag, size = 0x4, offset = 0, fixed_abs, tag = 'sflag constant byte address 0x0 - dummy sync flag']
  %s0 = inlined_call_operand.vmem [shape: s8[128,128], index: 0, kind: input, shape index: {}]
  %s1 = inlined_call_operand.vmem [shape: f32[8,128], index: 1, kind: input, shape index: {}]
  %s2 = inlined_call_operand.vmem [shape: f32[128,128], index: 2, kind: input, shape index: {}]
  %s3 = inlined_call_operand.vmem [shape: bf16[2,128,128], index: 3, kind: input, shape index: {}]
  %s4 = inlined_call_operand.vmem [shape: f32[2,1,128], index: 4, kind: input, shape index: {}, may-alias: {4,6}]
  %s5 = inlined_call_operand.vmem [shape: bf16[2,128,128], index: 5, kind: input, shape index: {}]
  %s6 = inlined_call_operand.vmem [shape: f32[2,1,128], index: 6, kind: input, shape index: {}, may-alias: {4,6}]
  %s7 = inlined_call_operand.vmem [shape: f32[128,128], index: 7, kind: output, shape index: {0}]
  %s8 = inlined_call_operand.vmem [shape: f32[8,128], index: 8, kind: output, shape index: {1}]
  %9 = xla_tuple %s7, %s8
  %s10 = sld [smem:[#allocation0]]
  $region61: #{gin_forward.1} parent=0
    _
  %s12 = ssub.s32 1, %s10
  %s13 = scalar_select 0, %s12, %s10
  // Predicated region
  $region2: #{gin_forward.1} parent=0 // pred_check
    _
  $region3: #{gin_forward.1} parent=0 // pred_check_branch
    %15 = sbr.rel (0) target = $region5
  $region4: #{gin_forward.1} parent=0 // pred_region
    _
  $region5: #{gin_forward.1} parent=0 // pred_fallthru
    _
  // Predicated region
  $region6: #{gin_forward.1} parent=0 // pred_check
    _
  $region7: #{gin_forward.1} parent=0 // pred_check_branch
    %17 = sbr.rel (0) target = $region9
  $region8: #{gin_forward.1} parent=0 // pred_region
    _
  $region9: #{gin_forward.1} parent=0 // pred_fallthru
    _
  // Predicated region
  $region10: #{gin_forward.1} parent=0 // pred_check
    _
  $region11: #{gin_forward.1} parent=0 // pred_check_branch
    %19 = sbr.rel (0) target = $region13
  $region12: #{gin_forward.1} parent=0 // pred_region
    _
  $region13: #{gin_forward.1} parent=0 // pred_fallthru
    _
  // Predicated region
  $region14: #{gin_forward.1} parent=0 // pred_check
    _
  $region15: #{gin_forward.1} parent=0 // pred_check_branch
    %21 = sbr.rel (0) target = $region17
  $region16: #{gin_forward.1} parent=0 // pred_region
    _
  $region17: #{gin_forward.1} parent=0 // pred_fallthru
    _
  // Predicated region
  $region18: #{gin_forward.1} parent=0 // pred_check
    _
  $region19: #{gin_forward.1} parent=0 // pred_check_branch
    %23 = sbr.rel (0) target = $region21
  $region20: #{gin_forward.1} parent=0 // pred_region
    _
  $region21: #{gin_forward.1} parent=0 // pred_fallthru
    _
  // Predicated region
  $region22: #{gin_forward.1} parent=0 // pred_check
    _
  $region23: #{gin_forward.1} parent=0 // pred_check_branch
    %25 = sbr.rel (0) target = $region25
  $region24: #{gin_forward.1} parent=0 // pred_region
    _
  $region25: #{gin_forward.1} parent=0 // pred_fallthru
    _
  %v26 = vld [vmem:[%s2] sm:$0xff]
  %v27 = vld [vmem:[%s2 + $0x8] sm:$0xff]
  %v28 = vld [vmem:[%s2 + $0x10] sm:$0xff]
  %v29 = vld [vmem:[%s2 + $0x18] sm:$0xff]
  %v30 = vld [vmem:[%s2 + $0x20] sm:$0xff]
  %v31 = vld [vmem:[%s2 + $0x28] sm:$0xff]
  %v32 = vld [vmem:[%s2 + $0x30] sm:$0xff]
  %v33 = vld [vmem:[%s2 + $0x38] sm:$0xff]
  %v34 = vld [vmem:[%s2 + $0x40] sm:$0xff]
  %v35 = vld [vmem:[%s2 + $0x48] sm:$0xff]
  %v36 = vld [vmem:[%s2 + $0x50] sm:$0xff]
  %v37 = vld [vmem:[%s2 + $0x58] sm:$0xff]
  %v38 = vld [vmem:[%s2 + $0x60] sm:$0xff]
  %v39 = vld [vmem:[%s2 + $0x68] sm:$0xff]
  %v40 = vld [vmem:[%s2 + $0x70] sm:$0xff]
  %v41 = vld [vmem:[%s2 + $0x78] sm:$0xff]
  %v42 = vpack.c.bf16 %v27, %v26
  %v43 = vpack.c.bf16 %v29, %v28
  %v44 = vpack.c.bf16 %v31, %v30
  %v45 = vpack.c.bf16 %v33, %v32
  %v46 = vpack.c.bf16 %v35, %v34
  %v47 = vpack.c.bf16 %v37, %v36
  %v48 = vpack.c.bf16 %v39, %v38
  %v49 = vpack.c.bf16 %v41, %v40
  // Predicated region
  $region26: #{gin_forward.1} parent=0 // pred_check
    _
  $region27: #{gin_forward.1} parent=0 // pred_check_branch
    %51 = sbr.rel (0) target = $region29
  $region28: #{gin_forward.1} parent=0 // pred_region
    loop: start=0, step=1, limit=1
    $region30: #{gin_forward.1} parent=28 // loop_pre_header
      _
    $region31: #{gin_forward.1} parent=28 // loop_header
      %s53 = sphi 0, %s57
      %p54 = scmp.ge.s32.totalorder %s53, 1
      %s58 = sphi %s0, %s0
      %s59 = sphi [#allocation3], [#allocation3]
    $region32: #{gin_forward.1} parent=28 // loop_header_branch
      %56 = sbr.rel (%p54) target = $region36
    $region33: #{gin_forward.1} parent=28 // loop_body
      %v60 = vld [vmem:[%s58] sm:$0xff]
      %61 = vst [vmem:[%s59] sm:$0xff] %v60
      %v62 = vld [vmem:[%s58 + $0x8] sm:$0xff]
      %63 = vst [vmem:[%s59 + $0x8] sm:$0xff] %v62
      %v64 = vld [vmem:[%s58 + $0x10] sm:$0xff]
      %65 = vst [vmem:[%s59 + $0x10] sm:$0xff] %v64
      %v66 = vld [vmem:[%s58 + $0x18] sm:$0xff]
      %67 = vst [vmem:[%s59 + $0x18] sm:$0xff] %v66
    $region34: #{gin_forward.1} parent=28 // loop_footer
      %s57 = sadd.s32 1, %s53
    $region35: #{gin_forward.1} parent=28 // loop_footer_branch
      %52 = sbr.rel target = $region31
    $region36: #{gin_forward.1} parent=28 // loop_exit
      _
  $region29: #{gin_forward.1} parent=0 // pred_fallthru
    _
  // Predicated region
  $region37: #{gin_forward.1} parent=0 // pred_check
    _
  $region38: #{gin_forward.1} parent=0 // pred_check_branch
    %69 = sbr.rel target = $region40
  $region39: #{gin_forward.1} parent=0 // pred_region
    _
  $region40: #{gin_forward.1} parent=0 // pred_fallthru
    _
  // Predicated region
  $region41: #{gin_forward.1} parent=0 // pred_check
    _
  $region42: #{gin_forward.1} parent=0 // pred_check_branch
    %72 = sbr.rel (0) target = $region44
  $region43: #{gin_forward.1} parent=0 // pred_region
    %73 = vsyncadd [#allocation5], 512
  $region44: #{gin_forward.1} parent=0 // pred_fallthru
    _
  %s74 = smul.u32 2, 16
  %s75 = smul.u32 %s74, 1
  %s76 = sshll.u32 %s75, 4
  %77 = dma.done [#allocation5], %s76
  %v78 = vld [vmem:[#allocation3] sm:$0xff]
  %v79 = vld [vmem:[#allocation3 + $0x8] sm:$0xff]
  %v80 = vld [vmem:[#allocation3 + $0x10] sm:$0xff]
  %v81 = vld [vmem:[#allocation3 + $0x18] sm:$0xff]
  %v82 = vunpack.c.0.s8 %v78
  %v83 = vunpack.c.1.s8 %v78
  %v84 = vunpack.c.2.s8 %v78
  %v85 = vunpack.c.3.s8 %v78
  %v86 = vunpack.c.0.s8 %v79
  %v87 = vunpack.c.1.s8 %v79
  %v88 = vunpack.c.2.s8 %v79
  %v89 = vunpack.c.3.s8 %v79
  %v90 = vunpack.c.0.s8 %v80
  %v91 = vunpack.c.1.s8 %v80
  %v92 = vunpack.c.2.s8 %v80
  %v93 = vunpack.c.3.s8 %v80
  %v94 = vunpack.c.0.s8 %v81
  %v95 = vunpack.c.1.s8 %v81
  %v96 = vunpack.c.2.s8 %v81
  %v97 = vunpack.c.3.s8 %v81
  %v98 = vcvt.s32.f32 %v82
  %v99 = vcvt.s32.f32 %v83
  %v100 = vcvt.s32.f32 %v84
  %v101 = vcvt.s32.f32 %v85
  %v102 = vcvt.s32.f32 %v86
  %v103 = vcvt.s32.f32 %v87
  %v104 = vcvt.s32.f32 %v88
  %v105 = vcvt.s32.f32 %v89
  %v106 = vcvt.s32.f32 %v90
  %v107 = vcvt.s32.f32 %v91
  %v108 = vcvt.s32.f32 %v92
  %v109 = vcvt.s32.f32 %v93
  %v110 = vcvt.s32.f32 %v94
  %v111 = vcvt.s32.f32 %v95
  %v112 = vcvt.s32.f32 %v96
  %v113 = vcvt.s32.f32 %v97
  %v114 = vpack.c.bf16 %v98, %v98
  %v115 = vpack.c.bf16 %v99, %v99
  %v116 = vpack.c.bf16 %v100, %v100
  %v117 = vpack.c.bf16 %v101, %v101
  %v118 = vpack.c.bf16 %v102, %v102
  %v119 = vpack.c.bf16 %v103, %v103
  %v120 = vpack.c.bf16 %v104, %v104
  %v121 = vpack.c.bf16 %v105, %v105
  %v122 = vpack.c.bf16 %v106, %v106
  %v123 = vpack.c.bf16 %v107, %v107
  %v124 = vpack.c.bf16 %v108, %v108
  %v125 = vpack.c.bf16 %v109, %v109
  %v126 = vpack.c.bf16 %v110, %v110
  %v127 = vpack.c.bf16 %v111, %v111
  %v128 = vpack.c.bf16 %v112, %v112
  %v129 = vpack.c.bf16 %v113, %v113
  %130 = vst [vmem:[#allocation2] sm:$0xf] %v114
  %131 = vst [vmem:[#allocation2 + $0x4] sm:$0xf] %v115
  %132 = vst [vmem:[#allocation2 + $0x8] sm:$0xf] %v116
  %133 = vst [vmem:[#allocation2 + $0xc] sm:$0xf] %v117
  %134 = vst [vmem:[#allocation2 + $0x10] sm:$0xf] %v118
  %135 = vst [vmem:[#allocation2 + $0x14] sm:$0xf] %v119
  %136 = vst [vmem:[#allocation2 + $0x18] sm:$0xf] %v120
  %137 = vst [vmem:[#allocation2 + $0x1c] sm:$0xf] %v121
  %138 = vst [vmem:[#allocation2 + $0x20] sm:$0xf] %v122
  %139 = vst [vmem:[#allocation2 + $0x24] sm:$0xf] %v123
  %140 = vst [vmem:[#allocation2 + $0x28] sm:$0xf] %v124
  %141 = vst [vmem:[#allocation2 + $0x2c] sm:$0xf] %v125
  %142 = vst [vmem:[#allocation2 + $0x30] sm:$0xf] %v126
  %143 = vst [vmem:[#allocation2 + $0x34] sm:$0xf] %v127
  %144 = vst [vmem:[#allocation2 + $0x38] sm:$0xf] %v128
  %145 = vst [vmem:[#allocation2 + $0x3c] sm:$0xf] %v129
  %v162 = vunpack.c.l.b16 %v114
  %v163 = vunpack.c.l.b16 %v115
  %v164 = vunpack.c.l.b16 %v116
  %v165 = vunpack.c.l.b16 %v117
  %v166 = vunpack.c.l.b16 %v118
  %v167 = vunpack.c.l.b16 %v119
  %v168 = vunpack.c.l.b16 %v120
  %v169 = vunpack.c.l.b16 %v121
  %v170 = vunpack.c.l.b16 %v122
  %v171 = vunpack.c.l.b16 %v123
  %v172 = vunpack.c.l.b16 %v124
  %v173 = vunpack.c.l.b16 %v125
  %v174 = vunpack.c.l.b16 %v126
  %v175 = vunpack.c.l.b16 %v127
  %v176 = vunpack.c.l.b16 %v128
  %v177 = vunpack.c.l.b16 %v129
  %v178 = vpack.c.b16 %v163, %v162
  %v179 = vpack.c.b16 %v165, %v164
  %v180 = vpack.c.b16 %v167, %v166
  %v181 = vpack.c.b16 %v169, %v168
  %v182 = vpack.c.b16 %v171, %v170
  %v183 = vpack.c.b16 %v173, %v172
  %v184 = vpack.c.b16 %v175, %v174
  %v185 = vpack.c.b16 %v177, %v176
  %194 = vmatpush.bf16.msra.mxu0 %v49
  %195 = vmatpush.bf16.msra.mxu0 %v48
  %196 = vmatpush.bf16.msra.mxu0 %v47
  %197 = vmatpush.bf16.msra.mxu0 %v46
  %198 = vmatpush.bf16.msra.mxu0 %v45
  %199 = vmatpush.bf16.msra.mxu0 %v44
  %200 = vmatpush.bf16.msra.mxu0 %v43
  %201 = vmatpush.bf16.msra.mxu0 %v42
  %202 = vmatmul.bf16.gmra.mxu0 %v178
  %v203 = vpop.f32.mrf.mxu0
  %v204 = vadd.f32 0.0, %v203
  %v205 = vpop.f32.mrf.mxu0
  %v206 = vadd.f32 0.0, %v205
  %207 = vmatmul.bf16.gmra.mxu0 %v179
  %v208 = vpop.f32.mrf.mxu0
  %v209 = vadd.f32 0.0, %v208
  %v210 = vpop.f32.mrf.mxu0
  %v211 = vadd.f32 0.0, %v210
  %212 = vmatmul.bf16.gmra.mxu0 %v180
  %v213 = vpop.f32.mrf.mxu0
  %v214 = vadd.f32 0.0, %v213
  %v215 = vpop.f32.mrf.mxu0
  %v216 = vadd.f32 0.0, %v215
  %217 = vmatmul.bf16.gmra.mxu0 %v181
  %v218 = vpop.f32.mrf.mxu0
  %v219 = vadd.f32 0.0, %v218
  %v220 = vpop.f32.mrf.mxu0
  %v221 = vadd.f32 0.0, %v220
  %222 = vmatmul.bf16.gmra.mxu0 %v182
  %v223 = vpop.f32.mrf.mxu0
  %v224 = vadd.f32 0.0, %v223
  %v225 = vpop.f32.mrf.mxu0
  %v226 = vadd.f32 0.0, %v225
  %227 = vmatmul.bf16.gmra.mxu0 %v183
  %v228 = vpop.f32.mrf.mxu0
  %v229 = vadd.f32 0.0, %v228
  %v230 = vpop.f32.mrf.mxu0
  %v231 = vadd.f32 0.0, %v230
  %232 = vmatmul.bf16.gmra.mxu0 %v184
  %v233 = vpop.f32.mrf.mxu0
  %v234 = vadd.f32 0.0, %v233
  %v235 = vpop.f32.mrf.mxu0
  %v236 = vadd.f32 0.0, %v235
  %237 = vmatmul.bf16.gmra.mxu0 %v185
  %v238 = vpop.f32.mrf.mxu0
  %v239 = vadd.f32 0.0, %v238
  %v240 = vpop.f32.mrf.mxu0
  %v241 = vadd.f32 0.0, %v240
  %242 = vdwg.mxu0
  %243 = vst [vmem:[#allocation4] sm:$0xff] %v204
  %244 = vst [vmem:[#allocation4 + $0x8] sm:$0xff] %v206
  %245 = vst [vmem:[#allocation4 + $0x10] sm:$0xff] %v209
  %246 = vst [vmem:[#allocation4 + $0x18] sm:$0xff] %v211
  %247 = vst [vmem:[#allocation4 + $0x20] sm:$0xff] %v214
  %248 = vst [vmem:[#allocation4 + $0x28] sm:$0xff] %v216
  %249 = vst [vmem:[#allocation4 + $0x30] sm:$0xff] %v219
  %250 = vst [vmem:[#allocation4 + $0x38] sm:$0xff] %v221
  %251 = vst [vmem:[#allocation4 + $0x40] sm:$0xff] %v224
  %252 = vst [vmem:[#allocation4 + $0x48] sm:$0xff] %v226
  %253 = vst [vmem:[#allocation4 + $0x50] sm:$0xff] %v229
  %254 = vst [vmem:[#allocation4 + $0x58] sm:$0xff] %v231
  %255 = vst [vmem:[#allocation4 + $0x60] sm:$0xff] %v234
  %256 = vst [vmem:[#allocation4 + $0x68] sm:$0xff] %v236
  %257 = vst [vmem:[#allocation4 + $0x70] sm:$0xff] %v239
  %258 = vst [vmem:[#allocation4 + $0x78] sm:$0xff] %v241
  %v259 = vld [vmem:[#allocation4] sm:$0xff]
  %v260 = vld [vmem:[#allocation4 + $0x8] sm:$0xff]
  %v261 = vld [vmem:[#allocation4 + $0x10] sm:$0xff]
  %v262 = vld [vmem:[#allocation4 + $0x18] sm:$0xff]
  %v263 = vld [vmem:[#allocation4 + $0x20] sm:$0xff]
  %v264 = vld [vmem:[#allocation4 + $0x28] sm:$0xff]
  %v265 = vld [vmem:[#allocation4 + $0x30] sm:$0xff]
  %v266 = vld [vmem:[#allocation4 + $0x38] sm:$0xff]
  %v267 = vld [vmem:[#allocation4 + $0x40] sm:$0xff]
  %v268 = vld [vmem:[#allocation4 + $0x48] sm:$0xff]
  %v269 = vld [vmem:[#allocation4 + $0x50] sm:$0xff]
  %v270 = vld [vmem:[#allocation4 + $0x58] sm:$0xff]
  %v271 = vld [vmem:[#allocation4 + $0x60] sm:$0xff]
  %v272 = vld [vmem:[#allocation4 + $0x68] sm:$0xff]
  %v273 = vld [vmem:[#allocation4 + $0x70] sm:$0xff]
  %v274 = vld [vmem:[#allocation4 + $0x78] sm:$0xff]
  %v275 = vadd.f32 %v26, %v259
  %v276 = vadd.f32 %v27, %v260
  %v277 = vadd.f32 %v28, %v261
  %v278 = vadd.f32 %v29, %v262
  %v279 = vadd.f32 %v30, %v263
  %v280 = vadd.f32 %v31, %v264
  %v281 = vadd.f32 %v32, %v265
  %v282 = vadd.f32 %v33, %v266
  %v283 = vadd.f32 %v34, %v267
  %v284 = vadd.f32 %v35, %v268
  %v285 = vadd.f32 %v36, %v269
  %v286 = vadd.f32 %v37, %v270
  %v287 = vadd.f32 %v38, %v271
  %v288 = vadd.f32 %v39, %v272
  %v289 = vadd.f32 %v40, %v273
  %v290 = vadd.f32 %v41, %v274
  %v291 = vpack.c.bf16 %v276, %v275
  %v292 = vpack.c.bf16 %v278, %v277
  %v293 = vpack.c.bf16 %v280, %v279
  %v294 = vpack.c.bf16 %v282, %v281
  %v295 = vpack.c.bf16 %v284, %v283
  %v296 = vpack.c.bf16 %v286, %v285
  %v297 = vpack.c.bf16 %v288, %v287
  %v298 = vpack.c.bf16 %v290, %v289
  %v299 = vld [vmem:[%s3] sm:$0xf]
  %v300 = vld [vmem:[%s3 + $0x4] sm:$0xf]
  %v301 = vld [vmem:[%s3 + $0x8] sm:$0xf]
  %v302 = vld [vmem:[%s3 + $0xc] sm:$0xf]
  %v303 = vld [vmem:[%s3 + $0x10] sm:$0xf]
  %v304 = vld [vmem:[%s3 + $0x14] sm:$0xf]
  %v305 = vld [vmem:[%s3 + $0x18] sm:$0xf]
  %v306 = vld [vmem:[%s3 + $0x1c] sm:$0xf]
  %v307 = vld [vmem:[%s3 + $0x20] sm:$0xf]
  %v308 = vld [vmem:[%s3 + $0x24] sm:$0xf]
  %v309 = vld [vmem:[%s3 + $0x28] sm:$0xf]
  %v310 = vld [vmem:[%s3 + $0x2c] sm:$0xf]
  %v311 = vld [vmem:[%s3 + $0x30] sm:$0xf]
  %v312 = vld [vmem:[%s3 + $0x34] sm:$0xf]
  %v313 = vld [vmem:[%s3 + $0x38] sm:$0xf]
  %v314 = vld [vmem:[%s3 + $0x3c] sm:$0xf]
  %v315 = vld [vmem:[%s4] sm:$0x1]
  %v317 = vperm.slane %v315, 0
  %v335 = vunpack.c.l.b16 %v299
  %v336 = vunpack.c.l.b16 %v300
  %v337 = vunpack.c.l.b16 %v301
  %v338 = vunpack.c.l.b16 %v302
  %v339 = vunpack.c.l.b16 %v303
  %v340 = vunpack.c.l.b16 %v304
  %v341 = vunpack.c.l.b16 %v305
  %v342 = vunpack.c.l.b16 %v306
  %v343 = vunpack.c.l.b16 %v307
  %v344 = vunpack.c.l.b16 %v308
  %v345 = vunpack.c.l.b16 %v309
  %v346 = vunpack.c.l.b16 %v310
  %v347 = vunpack.c.l.b16 %v311
  %v348 = vunpack.c.l.b16 %v312
  %v349 = vunpack.c.l.b16 %v313
  %v350 = vunpack.c.l.b16 %v314
  %v351 = vpack.c.b16 %v336, %v335
  %v352 = vpack.c.b16 %v338, %v337
  %v353 = vpack.c.b16 %v340, %v339
  %v354 = vpack.c.b16 %v342, %v341
  %v355 = vpack.c.b16 %v344, %v343
  %v356 = vpack.c.b16 %v346, %v345
  %v357 = vpack.c.b16 %v348, %v347
  %v358 = vpack.c.b16 %v350, %v349
  %367 = vmatpush.bf16.msra.mxu0 %v358
  %368 = vmatpush.bf16.msra.mxu0 %v357
  %369 = vmatpush.bf16.msra.mxu0 %v356
  %370 = vmatpush.bf16.msra.mxu0 %v355
  %371 = vmatpush.bf16.msra.mxu0 %v354
  %372 = vmatpush.bf16.msra.mxu0 %v353
  %373 = vmatpush.bf16.msra.mxu0 %v352
  %374 = vmatpush.bf16.msra.mxu0 %v351
  %375 = vmatmul.bf16.gmra.mxu0 %v291
  %v376 = vpop.f32.mrf.mxu0
  %v377 = vadd.f32 %v317, %v376
  %v378 = vpop.f32.mrf.mxu0
  %v379 = vadd.f32 %v317, %v378
  %380 = vmatmul.bf16.gmra.mxu0 %v292
  %v381 = vpop.f32.mrf.mxu0
  %v382 = vadd.f32 %v317, %v381
  %v383 = vpop.f32.mrf.mxu0
  %v384 = vadd.f32 %v317, %v383
  %385 = vmatmul.bf16.gmra.mxu0 %v293
  %v386 = vpop.f32.mrf.mxu0
  %v387 = vadd.f32 %v317, %v386
  %v388 = vpop.f32.mrf.mxu0
  %v389 = vadd.f32 %v317, %v388
  %390 = vmatmul.bf16.gmra.mxu0 %v294
  %v391 = vpop.f32.mrf.mxu0
  %v392 = vadd.f32 %v317, %v391
  %v393 = vpop.f32.mrf.mxu0
  %v394 = vadd.f32 %v317, %v393
  %395 = vmatmul.bf16.gmra.mxu0 %v295
  %v396 = vpop.f32.mrf.mxu0
  %v397 = vadd.f32 %v317, %v396
  %v398 = vpop.f32.mrf.mxu0
  %v399 = vadd.f32 %v317, %v398
  %400 = vmatmul.bf16.gmra.mxu0 %v296
  %v401 = vpop.f32.mrf.mxu0
  %v402 = vadd.f32 %v317, %v401
  %v403 = vpop.f32.mrf.mxu0
  %v404 = vadd.f32 %v317, %v403
  %405 = vmatmul.bf16.gmra.mxu0 %v297
  %v406 = vpop.f32.mrf.mxu0
  %v407 = vadd.f32 %v317, %v406
  %v408 = vpop.f32.mrf.mxu0
  %v409 = vadd.f32 %v317, %v408
  %410 = vmatmul.bf16.gmra.mxu0 %v298
  %v411 = vpop.f32.mrf.mxu0
  %v412 = vadd.f32 %v317, %v411
  %v413 = vpop.f32.mrf.mxu0
  %v414 = vadd.f32 %v317, %v413
  %415 = vdwg.mxu0
  %v416 = vmax.f32 %v377, 0.0
  %v417 = vmax.f32 %v379, 0.0
  %v418 = vmax.f32 %v382, 0.0
  %v419 = vmax.f32 %v384, 0.0
  %v420 = vmax.f32 %v387, 0.0
  %v421 = vmax.f32 %v389, 0.0
  %v422 = vmax.f32 %v392, 0.0
  %v423 = vmax.f32 %v394, 0.0
  %v424 = vmax.f32 %v397, 0.0
  %v425 = vmax.f32 %v399, 0.0
  %v426 = vmax.f32 %v402, 0.0
  %v427 = vmax.f32 %v404, 0.0
  %v428 = vmax.f32 %v407, 0.0
  %v429 = vmax.f32 %v409, 0.0
  %v430 = vmax.f32 %v412, 0.0
  %v431 = vmax.f32 %v414, 0.0
  %v432 = vpack.c.bf16 %v417, %v416
  %v433 = vpack.c.bf16 %v419, %v418
  %v434 = vpack.c.bf16 %v421, %v420
  %v435 = vpack.c.bf16 %v423, %v422
  %v436 = vpack.c.bf16 %v425, %v424
  %v437 = vpack.c.bf16 %v427, %v426
  %v438 = vpack.c.bf16 %v429, %v428
  %v439 = vpack.c.bf16 %v431, %v430
  %v440 = vld [vmem:[%s5] sm:$0xf]
  %v441 = vld [vmem:[%s5 + $0x4] sm:$0xf]
  %v442 = vld [vmem:[%s5 + $0x8] sm:$0xf]
  %v443 = vld [vmem:[%s5 + $0xc] sm:$0xf]
  %v444 = vld [vmem:[%s5 + $0x10] sm:$0xf]
  %v445 = vld [vmem:[%s5 + $0x14] sm:$0xf]
  %v446 = vld [vmem:[%s5 + $0x18] sm:$0xf]
  %v447 = vld [vmem:[%s5 + $0x1c] sm:$0xf]
  %v448 = vld [vmem:[%s5 + $0x20] sm:$0xf]
  %v449 = vld [vmem:[%s5 + $0x24] sm:$0xf]
  %v450 = vld [vmem:[%s5 + $0x28] sm:$0xf]
  %v451 = vld [vmem:[%s5 + $0x2c] sm:$0xf]
  %v452 = vld [vmem:[%s5 + $0x30] sm:$0xf]
  %v453 = vld [vmem:[%s5 + $0x34] sm:$0xf]
  %v454 = vld [vmem:[%s5 + $0x38] sm:$0xf]
  %v455 = vld [vmem:[%s5 + $0x3c] sm:$0xf]
  %v456 = vld [vmem:[%s6] sm:$0x1]
  %v458 = vperm.slane %v456, 0
  %v476 = vunpack.c.l.b16 %v440
  %v477 = vunpack.c.l.b16 %v441
  %v478 = vunpack.c.l.b16 %v442
  %v479 = vunpack.c.l.b16 %v443
  %v480 = vunpack.c.l.b16 %v444
  %v481 = vunpack.c.l.b16 %v445
  %v482 = vunpack.c.l.b16 %v446
  %v483 = vunpack.c.l.b16 %v447
  %v484 = vunpack.c.l.b16 %v448
  %v485 = vunpack.c.l.b16 %v449
  %v486 = vunpack.c.l.b16 %v450
  %v487 = vunpack.c.l.b16 %v451
  %v488 = vunpack.c.l.b16 %v452
  %v489 = vunpack.c.l.b16 %v453
  %v490 = vunpack.c.l.b16 %v454
  %v491 = vunpack.c.l.b16 %v455
  %v492 = vpack.c.b16 %v477, %v476
  %v493 = vpack.c.b16 %v479, %v478
  %v494 = vpack.c.b16 %v481, %v480
  %v495 = vpack.c.b16 %v483, %v482
  %v496 = vpack.c.b16 %v485, %v484
  %v497 = vpack.c.b16 %v487, %v486
  %v498 = vpack.c.b16 %v489, %v488
  %v499 = vpack.c.b16 %v491, %v490
  %508 = vmatpush.bf16.msra.mxu0 %v499
  %509 = vmatpush.bf16.msra.mxu0 %v498
  %510 = vmatpush.bf16.msra.mxu0 %v497
  %511 = vmatpush.bf16.msra.mxu0 %v496
  %512 = vmatpush.bf16.msra.mxu0 %v495
  %513 = vmatpush.bf16.msra.mxu0 %v494
  %514 = vmatpush.bf16.msra.mxu0 %v493
  %515 = vmatpush.bf16.msra.mxu0 %v492
  %516 = vmatmul.bf16.gmra.mxu0 %v432
  %v517 = vpop.f32.mrf.mxu0
  %v518 = vadd.f32 %v458, %v517
  %v519 = vpop.f32.mrf.mxu0
  %v520 = vadd.f32 %v458, %v519
  %521 = vmatmul.bf16.gmra.mxu0 %v433
  %v522 = vpop.f32.mrf.mxu0
  %v523 = vadd.f32 %v458, %v522
  %v524 = vpop.f32.mrf.mxu0
  %v525 = vadd.f32 %v458, %v524
  %526 = vmatmul.bf16.gmra.mxu0 %v434
  %v527 = vpop.f32.mrf.mxu0
  %v528 = vadd.f32 %v458, %v527
  %v529 = vpop.f32.mrf.mxu0
  %v530 = vadd.f32 %v458, %v529
  %531 = vmatmul.bf16.gmra.mxu0 %v435
  %v532 = vpop.f32.mrf.mxu0
  %v533 = vadd.f32 %v458, %v532
  %v534 = vpop.f32.mrf.mxu0
  %v535 = vadd.f32 %v458, %v534
  %536 = vmatmul.bf16.gmra.mxu0 %v436
  %v537 = vpop.f32.mrf.mxu0
  %v538 = vadd.f32 %v458, %v537
  %v539 = vpop.f32.mrf.mxu0
  %v540 = vadd.f32 %v458, %v539
  %541 = vmatmul.bf16.gmra.mxu0 %v437
  %v542 = vpop.f32.mrf.mxu0
  %v543 = vadd.f32 %v458, %v542
  %v544 = vpop.f32.mrf.mxu0
  %v545 = vadd.f32 %v458, %v544
  %546 = vmatmul.bf16.gmra.mxu0 %v438
  %v547 = vpop.f32.mrf.mxu0
  %v548 = vadd.f32 %v458, %v547
  %v549 = vpop.f32.mrf.mxu0
  %v550 = vadd.f32 %v458, %v549
  %551 = vmatmul.bf16.gmra.mxu0 %v439
  %v552 = vpop.f32.mrf.mxu0
  %v553 = vadd.f32 %v458, %v552
  %v554 = vpop.f32.mrf.mxu0
  %v555 = vadd.f32 %v458, %v554
  %556 = vdwg.mxu0
  %v557 = vmax.f32 %v518, 0.0
  %v558 = vmax.f32 %v520, 0.0
  %v559 = vmax.f32 %v523, 0.0
  %v560 = vmax.f32 %v525, 0.0
  %v561 = vmax.f32 %v528, 0.0
  %v562 = vmax.f32 %v530, 0.0
  %v563 = vmax.f32 %v533, 0.0
  %v564 = vmax.f32 %v535, 0.0
  %v565 = vmax.f32 %v538, 0.0
  %v566 = vmax.f32 %v540, 0.0
  %v567 = vmax.f32 %v543, 0.0
  %v568 = vmax.f32 %v545, 0.0
  %v569 = vmax.f32 %v548, 0.0
  %v570 = vmax.f32 %v550, 0.0
  %v571 = vmax.f32 %v553, 0.0
  %v572 = vmax.f32 %v555, 0.0
  %v573 = vld [vmem:[#allocation2] sm:$0xf]
  %v574 = vld [vmem:[#allocation2 + $0x4] sm:$0xf]
  %v575 = vld [vmem:[#allocation2 + $0x8] sm:$0xf]
  %v576 = vld [vmem:[#allocation2 + $0xc] sm:$0xf]
  %v577 = vld [vmem:[#allocation2 + $0x10] sm:$0xf]
  %v578 = vld [vmem:[#allocation2 + $0x14] sm:$0xf]
  %v579 = vld [vmem:[#allocation2 + $0x18] sm:$0xf]
  %v580 = vld [vmem:[#allocation2 + $0x1c] sm:$0xf]
  %v581 = vld [vmem:[#allocation2 + $0x20] sm:$0xf]
  %v582 = vld [vmem:[#allocation2 + $0x24] sm:$0xf]
  %v583 = vld [vmem:[#allocation2 + $0x28] sm:$0xf]
  %v584 = vld [vmem:[#allocation2 + $0x2c] sm:$0xf]
  %v585 = vld [vmem:[#allocation2 + $0x30] sm:$0xf]
  %v586 = vld [vmem:[#allocation2 + $0x34] sm:$0xf]
  %v587 = vld [vmem:[#allocation2 + $0x38] sm:$0xf]
  %v588 = vld [vmem:[#allocation2 + $0x3c] sm:$0xf]
  %v589 = vpack.c.bf16 %v558, %v557
  %v590 = vpack.c.bf16 %v560, %v559
  %v591 = vpack.c.bf16 %v562, %v561
  %v592 = vpack.c.bf16 %v564, %v563
  %v593 = vpack.c.bf16 %v566, %v565
  %v594 = vpack.c.bf16 %v568, %v567
  %v595 = vpack.c.bf16 %v570, %v569
  %v596 = vpack.c.bf16 %v572, %v571
  %v613 = vunpack.c.l.b16 %v573
  %v614 = vunpack.c.l.b16 %v574
  %v615 = vunpack.c.l.b16 %v575
  %v616 = vunpack.c.l.b16 %v576
  %v617 = vunpack.c.l.b16 %v577
  %v618 = vunpack.c.l.b16 %v578
  %v619 = vunpack.c.l.b16 %v579
  %v620 = vunpack.c.l.b16 %v580
  %v621 = vunpack.c.l.b16 %v581
  %v622 = vunpack.c.l.b16 %v582
  %v623 = vunpack.c.l.b16 %v583
  %v624 = vunpack.c.l.b16 %v584
  %v625 = vunpack.c.l.b16 %v585
  %v626 = vunpack.c.l.b16 %v586
  %v627 = vunpack.c.l.b16 %v587
  %v628 = vunpack.c.l.b16 %v588
  %v629 = vpack.c.b16 %v614, %v613
  %v630 = vpack.c.b16 %v616, %v615
  %v631 = vpack.c.b16 %v618, %v617
  %v632 = vpack.c.b16 %v620, %v619
  %v633 = vpack.c.b16 %v622, %v621
  %v634 = vpack.c.b16 %v624, %v623
  %v635 = vpack.c.b16 %v626, %v625
  %v636 = vpack.c.b16 %v628, %v627
  %645 = vmatpush.bf16.msra.mxu0 %v596
  %646 = vmatpush.bf16.msra.mxu0 %v595
  %647 = vmatpush.bf16.msra.mxu0 %v594
  %648 = vmatpush.bf16.msra.mxu0 %v593
  %649 = vmatpush.bf16.msra.mxu0 %v592
  %650 = vmatpush.bf16.msra.mxu0 %v591
  %651 = vmatpush.bf16.msra.mxu0 %v590
  %652 = vmatpush.bf16.msra.mxu0 %v589
  %653 = vmatmul.bf16.gmra.mxu0 %v629
  %v654 = vpop.f32.mrf.mxu0
  %v655 = vadd.f32 0.0, %v654
  %v656 = vpop.f32.mrf.mxu0
  %v657 = vadd.f32 0.0, %v656
  %658 = vmatmul.bf16.gmra.mxu0 %v630
  %v659 = vpop.f32.mrf.mxu0
  %v660 = vadd.f32 0.0, %v659
  %v661 = vpop.f32.mrf.mxu0
  %v662 = vadd.f32 0.0, %v661
  %663 = vmatmul.bf16.gmra.mxu0 %v631
  %v664 = vpop.f32.mrf.mxu0
  %v665 = vadd.f32 0.0, %v664
  %v666 = vpop.f32.mrf.mxu0
  %v667 = vadd.f32 0.0, %v666
  %668 = vmatmul.bf16.gmra.mxu0 %v632
  %v669 = vpop.f32.mrf.mxu0
  %v670 = vadd.f32 0.0, %v669
  %v671 = vpop.f32.mrf.mxu0
  %v672 = vadd.f32 0.0, %v671
  %673 = vmatmul.bf16.gmra.mxu0 %v633
  %v674 = vpop.f32.mrf.mxu0
  %v675 = vadd.f32 0.0, %v674
  %v676 = vpop.f32.mrf.mxu0
  %v677 = vadd.f32 0.0, %v676
  %678 = vmatmul.bf16.gmra.mxu0 %v634
  %v679 = vpop.f32.mrf.mxu0
  %v680 = vadd.f32 0.0, %v679
  %v681 = vpop.f32.mrf.mxu0
  %v682 = vadd.f32 0.0, %v681
  %683 = vmatmul.bf16.gmra.mxu0 %v635
  %v684 = vpop.f32.mrf.mxu0
  %v685 = vadd.f32 0.0, %v684
  %v686 = vpop.f32.mrf.mxu0
  %v687 = vadd.f32 0.0, %v686
  %688 = vmatmul.bf16.gmra.mxu0 %v636
  %v689 = vpop.f32.mrf.mxu0
  %v690 = vadd.f32 0.0, %v689
  %v691 = vpop.f32.mrf.mxu0
  %v692 = vadd.f32 0.0, %v691
  %693 = vdwg.mxu0
  %v694 = vadd.f32 %v557, %v655
  %v695 = vadd.f32 %v558, %v657
  %v696 = vadd.f32 %v559, %v660
  %v697 = vadd.f32 %v560, %v662
  %v698 = vadd.f32 %v561, %v665
  %v699 = vadd.f32 %v562, %v667
  %v700 = vadd.f32 %v563, %v670
  %v701 = vadd.f32 %v564, %v672
  %v702 = vadd.f32 %v565, %v675
  %v703 = vadd.f32 %v566, %v677
  %v704 = vadd.f32 %v567, %v680
  %v705 = vadd.f32 %v568, %v682
  %v706 = vadd.f32 %v569, %v685
  %v707 = vadd.f32 %v570, %v687
  %v708 = vadd.f32 %v571, %v690
  %v709 = vadd.f32 %v572, %v692
  %v710 = vpack.c.bf16 %v695, %v694
  %v711 = vpack.c.bf16 %v697, %v696
  %v712 = vpack.c.bf16 %v699, %v698
  %v713 = vpack.c.bf16 %v701, %v700
  %v714 = vpack.c.bf16 %v703, %v702
  %v715 = vpack.c.bf16 %v705, %v704
  %v716 = vpack.c.bf16 %v707, %v706
  %v717 = vpack.c.bf16 %v709, %v708
  %s718 = scalar_lea.vmem %s3, 64
  %v719 = vld [vmem:[%s718] sm:$0xf]
  %v720 = vld [vmem:[%s718 + $0x4] sm:$0xf]
  %v721 = vld [vmem:[%s718 + $0x8] sm:$0xf]
  %v722 = vld [vmem:[%s718 + $0xc] sm:$0xf]
  %v723 = vld [vmem:[%s718 + $0x10] sm:$0xf]
  %v724 = vld [vmem:[%s718 + $0x14] sm:$0xf]
  %v725 = vld [vmem:[%s718 + $0x18] sm:$0xf]
  %v726 = vld [vmem:[%s718 + $0x1c] sm:$0xf]
  %v727 = vld [vmem:[%s718 + $0x20] sm:$0xf]
  %v728 = vld [vmem:[%s718 + $0x24] sm:$0xf]
  %v729 = vld [vmem:[%s718 + $0x28] sm:$0xf]
  %v730 = vld [vmem:[%s718 + $0x2c] sm:$0xf]
  %v731 = vld [vmem:[%s718 + $0x30] sm:$0xf]
  %v732 = vld [vmem:[%s718 + $0x34] sm:$0xf]
  %v733 = vld [vmem:[%s718 + $0x38] sm:$0xf]
  %v734 = vld [vmem:[%s718 + $0x3c] sm:$0xf]
  %s735 = scalar_lea.vmem %s4, 1
  %v736 = vld [vmem:[%s735] sm:$0x1]
  %v738 = vperm.slane %v736, 0
  %v756 = vunpack.c.l.b16 %v719
  %v757 = vunpack.c.l.b16 %v720
  %v758 = vunpack.c.l.b16 %v721
  %v759 = vunpack.c.l.b16 %v722
  %v760 = vunpack.c.l.b16 %v723
  %v761 = vunpack.c.l.b16 %v724
  %v762 = vunpack.c.l.b16 %v725
  %v763 = vunpack.c.l.b16 %v726
  %v764 = vunpack.c.l.b16 %v727
  %v765 = vunpack.c.l.b16 %v728
  %v766 = vunpack.c.l.b16 %v729
  %v767 = vunpack.c.l.b16 %v730
  %v768 = vunpack.c.l.b16 %v731
  %v769 = vunpack.c.l.b16 %v732
  %v770 = vunpack.c.l.b16 %v733
  %v771 = vunpack.c.l.b16 %v734
  %v772 = vpack.c.b16 %v757, %v756
  %v773 = vpack.c.b16 %v759, %v758
  %v774 = vpack.c.b16 %v761, %v760
  %v775 = vpack.c.b16 %v763, %v762
  %v776 = vpack.c.b16 %v765, %v764
  %v777 = vpack.c.b16 %v767, %v766
  %v778 = vpack.c.b16 %v769, %v768
  %v779 = vpack.c.b16 %v771, %v770
  %788 = vmatpush.bf16.msra.mxu0 %v779
  %789 = vmatpush.bf16.msra.mxu0 %v778
  %790 = vmatpush.bf16.msra.mxu0 %v777
  %791 = vmatpush.bf16.msra.mxu0 %v776
  %792 = vmatpush.bf16.msra.mxu0 %v775
  %793 = vmatpush.bf16.msra.mxu0 %v774
  %794 = vmatpush.bf16.msra.mxu0 %v773
  %795 = vmatpush.bf16.msra.mxu0 %v772
  %796 = vmatmul.bf16.gmra.mxu0 %v710
  %v797 = vpop.f32.mrf.mxu0
  %v798 = vadd.f32 %v738, %v797
  %v799 = vpop.f32.mrf.mxu0
  %v800 = vadd.f32 %v738, %v799
  %801 = vmatmul.bf16.gmra.mxu0 %v711
  %v802 = vpop.f32.mrf.mxu0
  %v803 = vadd.f32 %v738, %v802
  %v804 = vpop.f32.mrf.mxu0
  %v805 = vadd.f32 %v738, %v804
  %806 = vmatmul.bf16.gmra.mxu0 %v712
  %v807 = vpop.f32.mrf.mxu0
  %v808 = vadd.f32 %v738, %v807
  %v809 = vpop.f32.mrf.mxu0
  %v810 = vadd.f32 %v738, %v809
  %811 = vmatmul.bf16.gmra.mxu0 %v713
  %v812 = vpop.f32.mrf.mxu0
  %v813 = vadd.f32 %v738, %v812
  %v814 = vpop.f32.mrf.mxu0
  %v815 = vadd.f32 %v738, %v814
  %816 = vmatmul.bf16.gmra.mxu0 %v714
  %v817 = vpop.f32.mrf.mxu0
  %v818 = vadd.f32 %v738, %v817
  %v819 = vpop.f32.mrf.mxu0
  %v820 = vadd.f32 %v738, %v819
  %821 = vmatmul.bf16.gmra.mxu0 %v715
  %v822 = vpop.f32.mrf.mxu0
  %v823 = vadd.f32 %v738, %v822
  %v824 = vpop.f32.mrf.mxu0
  %v825 = vadd.f32 %v738, %v824
  %826 = vmatmul.bf16.gmra.mxu0 %v716
  %v827 = vpop.f32.mrf.mxu0
  %v828 = vadd.f32 %v738, %v827
  %v829 = vpop.f32.mrf.mxu0
  %v830 = vadd.f32 %v738, %v829
  %831 = vmatmul.bf16.gmra.mxu0 %v717
  %v832 = vpop.f32.mrf.mxu0
  %v833 = vadd.f32 %v738, %v832
  %v834 = vpop.f32.mrf.mxu0
  %v835 = vadd.f32 %v738, %v834
  %836 = vdwg.mxu0
  %v837 = vmax.f32 %v798, 0.0
  %v838 = vmax.f32 %v800, 0.0
  %v839 = vmax.f32 %v803, 0.0
  %v840 = vmax.f32 %v805, 0.0
  %v841 = vmax.f32 %v808, 0.0
  %v842 = vmax.f32 %v810, 0.0
  %v843 = vmax.f32 %v813, 0.0
  %v844 = vmax.f32 %v815, 0.0
  %v845 = vmax.f32 %v818, 0.0
  %v846 = vmax.f32 %v820, 0.0
  %v847 = vmax.f32 %v823, 0.0
  %v848 = vmax.f32 %v825, 0.0
  %v849 = vmax.f32 %v828, 0.0
  %v850 = vmax.f32 %v830, 0.0
  %v851 = vmax.f32 %v833, 0.0
  %v852 = vmax.f32 %v835, 0.0
  %v853 = vpack.c.bf16 %v838, %v837
  %v854 = vpack.c.bf16 %v840, %v839
  %v855 = vpack.c.bf16 %v842, %v841
  %v856 = vpack.c.bf16 %v844, %v843
  %v857 = vpack.c.bf16 %v846, %v845
  %v858 = vpack.c.bf16 %v848, %v847
  %v859 = vpack.c.bf16 %v850, %v849
  %v860 = vpack.c.bf16 %v852, %v851
  %s861 = scalar_lea.vmem %s5, 64
  %v862 = vld [vmem:[%s861] sm:$0xf]
  %v863 = vld [vmem:[%s861 + $0x4] sm:$0xf]
  %v864 = vld [vmem:[%s861 + $0x8] sm:$0xf]
  %v865 = vld [vmem:[%s861 + $0xc] sm:$0xf]
  %v866 = vld [vmem:[%s861 + $0x10] sm:$0xf]
  %v867 = vld [vmem:[%s861 + $0x14] sm:$0xf]
  %v868 = vld [vmem:[%s861 + $0x18] sm:$0xf]
  %v869 = vld [vmem:[%s861 + $0x1c] sm:$0xf]
  %v870 = vld [vmem:[%s861 + $0x20] sm:$0xf]
  %v871 = vld [vmem:[%s861 + $0x24] sm:$0xf]
  %v872 = vld [vmem:[%s861 + $0x28] sm:$0xf]
  %v873 = vld [vmem:[%s861 + $0x2c] sm:$0xf]
  %v874 = vld [vmem:[%s861 + $0x30] sm:$0xf]
  %v875 = vld [vmem:[%s861 + $0x34] sm:$0xf]
  %v876 = vld [vmem:[%s861 + $0x38] sm:$0xf]
  %v877 = vld [vmem:[%s861 + $0x3c] sm:$0xf]
  %s878 = scalar_lea.vmem %s6, 1
  %v879 = vld [vmem:[%s878] sm:$0x1]
  %v881 = vperm.slane %v879, 0
  %v899 = vunpack.c.l.b16 %v862
  %v900 = vunpack.c.l.b16 %v863
  %v901 = vunpack.c.l.b16 %v864
  %v902 = vunpack.c.l.b16 %v865
  %v903 = vunpack.c.l.b16 %v866
  %v904 = vunpack.c.l.b16 %v867
  %v905 = vunpack.c.l.b16 %v868
  %v906 = vunpack.c.l.b16 %v869
  %v907 = vunpack.c.l.b16 %v870
  %v908 = vunpack.c.l.b16 %v871
  %v909 = vunpack.c.l.b16 %v872
  %v910 = vunpack.c.l.b16 %v873
  %v911 = vunpack.c.l.b16 %v874
  %v912 = vunpack.c.l.b16 %v875
  %v913 = vunpack.c.l.b16 %v876
  %v914 = vunpack.c.l.b16 %v877
  %v915 = vpack.c.b16 %v900, %v899
  %v916 = vpack.c.b16 %v902, %v901
  %v917 = vpack.c.b16 %v904, %v903
  %v918 = vpack.c.b16 %v906, %v905
  %v919 = vpack.c.b16 %v908, %v907
  %v920 = vpack.c.b16 %v910, %v909
  %v921 = vpack.c.b16 %v912, %v911
  %v922 = vpack.c.b16 %v914, %v913
  %931 = vmatpush.bf16.msra.mxu0 %v922
  %932 = vmatpush.bf16.msra.mxu0 %v921
  %933 = vmatpush.bf16.msra.mxu0 %v920
  %934 = vmatpush.bf16.msra.mxu0 %v919
  %935 = vmatpush.bf16.msra.mxu0 %v918
  %936 = vmatpush.bf16.msra.mxu0 %v917
  %937 = vmatpush.bf16.msra.mxu0 %v916
  %938 = vmatpush.bf16.msra.mxu0 %v915
  %939 = vmatmul.bf16.gmra.mxu0 %v853
  %v940 = vpop.f32.mrf.mxu0
  %v941 = vadd.f32 %v881, %v940
  %v942 = vpop.f32.mrf.mxu0
  %v943 = vadd.f32 %v881, %v942
  %944 = vmatmul.bf16.gmra.mxu0 %v854
  %v945 = vpop.f32.mrf.mxu0
  %v946 = vadd.f32 %v881, %v945
  %v947 = vpop.f32.mrf.mxu0
  %v948 = vadd.f32 %v881, %v947
  %949 = vmatmul.bf16.gmra.mxu0 %v855
  %v950 = vpop.f32.mrf.mxu0
  %v951 = vadd.f32 %v881, %v950
  %v952 = vpop.f32.mrf.mxu0
  %v953 = vadd.f32 %v881, %v952
  %954 = vmatmul.bf16.gmra.mxu0 %v856
  %v955 = vpop.f32.mrf.mxu0
  %v956 = vadd.f32 %v881, %v955
  %v957 = vpop.f32.mrf.mxu0
  %v958 = vadd.f32 %v881, %v957
  %959 = vmatmul.bf16.gmra.mxu0 %v857
  %v960 = vpop.f32.mrf.mxu0
  %v961 = vadd.f32 %v881, %v960
  %v962 = vpop.f32.mrf.mxu0
  %v963 = vadd.f32 %v881, %v962
  %964 = vmatmul.bf16.gmra.mxu0 %v858
  %v965 = vpop.f32.mrf.mxu0
  %v966 = vadd.f32 %v881, %v965
  %v967 = vpop.f32.mrf.mxu0
  %v968 = vadd.f32 %v881, %v967
  %969 = vmatmul.bf16.gmra.mxu0 %v859
  %v970 = vpop.f32.mrf.mxu0
  %v971 = vadd.f32 %v881, %v970
  %v972 = vpop.f32.mrf.mxu0
  %v973 = vadd.f32 %v881, %v972
  %974 = vmatmul.bf16.gmra.mxu0 %v860
  %v975 = vpop.f32.mrf.mxu0
  %v976 = vadd.f32 %v881, %v975
  %v977 = vpop.f32.mrf.mxu0
  %v978 = vadd.f32 %v881, %v977
  %979 = vdwg.mxu0
  %v980 = vmax.f32 %v941, 0.0
  %v981 = vmax.f32 %v943, 0.0
  %v982 = vmax.f32 %v946, 0.0
  %v983 = vmax.f32 %v948, 0.0
  %v984 = vmax.f32 %v951, 0.0
  %v985 = vmax.f32 %v953, 0.0
  %v986 = vmax.f32 %v956, 0.0
  %v987 = vmax.f32 %v958, 0.0
  %v988 = vmax.f32 %v961, 0.0
  %v989 = vmax.f32 %v963, 0.0
  %v990 = vmax.f32 %v966, 0.0
  %v991 = vmax.f32 %v968, 0.0
  %v992 = vmax.f32 %v971, 0.0
  %v993 = vmax.f32 %v973, 0.0
  %v994 = vmax.f32 %v976, 0.0
  %v995 = vmax.f32 %v978, 0.0
  %996 = vst [vmem:[%s7] sm:$0xff] %v980
  %997 = vst [vmem:[%s7 + $0x8] sm:$0xff] %v981
  %998 = vst [vmem:[%s7 + $0x10] sm:$0xff] %v982
  %999 = vst [vmem:[%s7 + $0x18] sm:$0xff] %v983
  %1000 = vst [vmem:[%s7 + $0x20] sm:$0xff] %v984
  %1001 = vst [vmem:[%s7 + $0x28] sm:$0xff] %v985
  %1002 = vst [vmem:[%s7 + $0x30] sm:$0xff] %v986
  %1003 = vst [vmem:[%s7 + $0x38] sm:$0xff] %v987
  %1004 = vst [vmem:[%s7 + $0x40] sm:$0xff] %v988
  %1005 = vst [vmem:[%s7 + $0x48] sm:$0xff] %v989
  %1006 = vst [vmem:[%s7 + $0x50] sm:$0xff] %v990
  %1007 = vst [vmem:[%s7 + $0x58] sm:$0xff] %v991
  %1008 = vst [vmem:[%s7 + $0x60] sm:$0xff] %v992
  %1009 = vst [vmem:[%s7 + $0x68] sm:$0xff] %v993
  %1010 = vst [vmem:[%s7 + $0x70] sm:$0xff] %v994
  %1011 = vst [vmem:[%s7 + $0x78] sm:$0xff] %v995
  %v1012 = vld [vmem:[%s1] sm:$0xff]
  %v1013 = vpack.c.bf16 %v1012, %v1012
  %v1014 = vpack.c.bf16 %v981, %v980
  %v1015 = vpack.c.bf16 %v983, %v982
  %v1016 = vpack.c.bf16 %v985, %v984
  %v1017 = vpack.c.bf16 %v987, %v986
  %v1018 = vpack.c.bf16 %v989, %v988
  %v1019 = vpack.c.bf16 %v991, %v990
  %v1020 = vpack.c.bf16 %v993, %v992
  %v1021 = vpack.c.bf16 %v995, %v994
  %1022 = vmatpush.bf16.msra.mxu0 %v1021
  %1023 = vmatpush.bf16.msra.mxu0 %v1020
  %1024 = vmatpush.bf16.msra.mxu0 %v1019
  %1025 = vmatpush.bf16.msra.mxu0 %v1018
  %1026 = vmatpush.bf16.msra.mxu0 %v1017
  %1027 = vmatpush.bf16.msra.mxu0 %v1016
  %1028 = vmatpush.bf16.msra.mxu0 %v1015
  %1029 = vmatpush.bf16.msra.mxu0 %v1014
  %1030 = vmatmul.bf16.gmra.mxu0 %v1013
  %v1031 = vpop.f32.mrf.mxu0
  %v1032 = vadd.f32 0.0, %v1031
  %v1033 = vpop.f32.mrf.mxu0
  %1034 = vdwg.mxu0
  %1035 = vst [vmem:[%s8] sm:$0xff] %v1032
  // Predicated region
  $region45: #{gin_forward.1} parent=0 // pred_check
    _
  $region46: #{gin_forward.1} parent=0 // pred_check_branch
    %1037 = sbr.rel (0) target = $region48
  $region47: #{gin_forward.1} parent=0 // pred_region
    _
  $region48: #{gin_forward.1} parent=0 // pred_fallthru
    _
  // Predicated region
  $region49: #{gin_forward.1} parent=0 // pred_check
    _
  $region50: #{gin_forward.1} parent=0 // pred_check_branch
    %1039 = sbr.rel (0) target = $region52
  $region51: #{gin_forward.1} parent=0 // pred_region
    _
  $region52: #{gin_forward.1} parent=0 // pred_fallthru
    _
  // Predicated region
  $region53: #{gin_forward.1} parent=0 // pred_check
    _
  $region54: #{gin_forward.1} parent=0 // pred_check_branch
    %1041 = sbr.rel (0) target = $region56
  $region55: #{gin_forward.1} parent=0 // pred_region
    _
  $region56: #{gin_forward.1} parent=0 // pred_fallthru
    _
  // Predicated region
  $region57: #{gin_forward.1} parent=0 // pred_check
    _
  $region58: #{gin_forward.1} parent=0 // pred_check_branch
    %1043 = sbr.rel (0) target = $region60
  $region59: #{gin_forward.1} parent=0 // pred_region
    _
  $region60: #{gin_forward.1} parent=0 // pred_fallthru
    _
  %1044 = vsyncmov [#allocation5]
  %s1045 = vpop.sfrf %1044
  %p1046 = scmp.eq.s32.totalorder %s1045, 0
  %p1047 = pneg %p1046
  %1049 = shalt.err (%p1047)
  %s1050 = scalar_lea.sflag [#allocation5], 1
  %1051 = vsyncmov %s1050
  %s1052 = vpop.sfrf %1051
  %p1053 = scmp.eq.s32.totalorder %s1052, 0
  %p1054 = pneg %p1053
  %1056 = shalt.err (%p1054)

</llo_original>
